<compile_context>
chip_gen: v7x
topology: tpu7x:2x2x1
jax: 0.10.0
libtpu: 0.0.40
codegen_flags: <defaults>
</compile_context>

<pallas_src>
import jax
import jax.numpy as jnp
from jax.experimental import pallas as pl
from jax.experimental.pallas import tpu as pltpu


def _round_up(x: int, m: int) -> int:
    return (x + m - 1) // m * m


def _pick_tile_n(n: int, target: int):
    """Pick a row-tile size (multiple of 16 for bf16 sublane packing).

    Prefer a divisor of `n` (no row padding, no post-kernel slice); fall back
    to padding `n` up to a multiple of the tile only when `n` has no usefully
    large multiple-of-16 divisor.
    Returns (tile_n, n_padded).
    """
    target = max(16, (target // 16) * 16)
    if n % 16 == 0 and n <= target:
        return n, n                       # single full block, no padding
    if n % 16 == 0:
        best = 16
        for cand in range(16, target + 1, 16):
            if n % cand == 0:
                best = cand
        if best * 4 >= target:            # big enough divisor -> no padding
            return best, n
    tile = min(target, _round_up(n, 16))
    return tile, _round_up(n, tile)


def _patch_proj_kernel(p_ref, w_ref, b_ref, o_ref):
    # p_ref: (TILE_N, K)      bf16   patch rows (K unpadded)
    # w_ref: (K, E_pad)       bf16   projection weight (VMEM-resident)
    # b_ref: (1, E_pad)       f32    bias (VMEM-resident)
    # o_ref: (TILE_N, E_pad)  activation dtype
    acc = jnp.dot(p_ref[...], w_ref[...], preferred_element_type=jnp.float32)
    o_ref[...] = (acc + b_ref[...]).astype(o_ref.dtype)


def patch_embed_forward(x, weight, bias, patch_size, *, tile_n_target=1024):
    """Forward pass of PatchEmbed.

    x:      (B, C, T, H, W)
    weight: (E, C, P, P)  Conv2d weight (kernel_size == stride == P)
    bias:   (E,)          Conv2d bias
    Returns (tokens, T, W_patches) with tokens of shape (B*T, num_patches, E),
    matching `proj(x).flatten(2).transpose(1, 2)` of the PyTorch module.

    Numerics contract: inputs/weights are rounded to bf16 for the MXU matmul
    (f32 accumulation), so results differ from a pure-f32 Conv2d by ~1e-2 rel.
    """
    B, C, T, H, W = x.shape
    P = patch_size
    E = weight.shape[0]
    Hp, Wp = H // P, W // P
    num_patches = Hp * Wp
    BT = B * T

    out_dtype = x.dtype
    compute_dtype = jnp.bfloat16

    # Cast to bf16 BEFORE the rearrange/im2col so the XLA transpose moves
    # 2-byte elements.  Patch order is row-major over (hp, wp); feature order
    # (c, ph, pw) matches weight.reshape(E, C*P*P).
    # TODO(synk): the small-dim (C, P, P) permute has no robust in-kernel
    # Mosaic lowering, so the im2col stays in XLA as one fused transpose.
    x_c = x.astype(compute_dtype)
    x_bt = jnp.transpose(x_c, (0, 2, 1, 3, 4)).reshape(BT, C, H, W)
    patches = x_bt.reshape(BT, C, Hp, P, Wp, P)
    patches = jnp.transpose(patches, (0, 2, 4, 1, 3, 5))      # (BT,Hp,Wp,C,P,P)
    patches = patches.reshape(BT * num_patches, C * P * P)    # (N, K) bf16

    N, K = patches.shape

    # Only E gets lane padding (and only when needed); K stays unpadded — the
    # patches block's last dim equals the full array dim, which is legal, and
    # skipping the K pad avoids inflating the big array's HBM traffic.
    E_pad = _round_up(E, 128)

    tile_n, N_pad = _pick_tile_n(N, tile_n_target)
    if N_pad != N:
        patches = jnp.pad(patches, ((0, N_pad - N), (0, 0)))

    w_p = weight.reshape(E, K).T                               # (K, E)
    b_p = bias.reshape(1, E).astype(jnp.float32)
    if E_pad != E:
        w_p = jnp.pad(w_p, ((0, 0), (0, E_pad - E)))
        b_p = jnp.pad(b_p, ((0, 0), (0, E_pad - E)))
    w_p = w_p.astype(compute_dtype)

    out_isize = jnp.dtype(out_dtype).itemsize
    grid_len = N_pad // tile_n

    # VMEM budget: double-buffered patches + output, resident weight + bias.
    vmem_needed = (2 * tile_n * K * 2
                   + 2 * K * E_pad * 2
                   + 2 * E_pad * 4
                   + 2 * tile_n * E_pad * out_isize)
    vmem_limit = int(min(64 * 1024 * 1024,
                         max(32 * 1024 * 1024, (vmem_needed * 3) // 2)))

    cost = pl.CostEstimate(
        flops=2 * N_pad * K * E_pad,
        transcendentals=0,
        bytes_accessed=(N_pad * K * 2 + K * E_pad * 2 + E_pad * 4
                        + N_pad * E_pad * out_isize))

    out = pl.pallas_call(
        _patch_proj_kernel,
        out_shape=jax.ShapeDtypeStruct((N_pad, E_pad), out_dtype),
        grid=(grid_len,),
        in_specs=[
            pl.BlockSpec((tile_n, K), lambda i: (i, 0)),
            pl.BlockSpec((K, E_pad), lambda i: (0, 0)),   # resident weight
            pl.BlockSpec((1, E_pad), lambda i: (0, 0)),   # resident bias
        ],
        out_specs=pl.BlockSpec((tile_n, E_pad), lambda i: (i, 0)),
        compiler_params=pltpu.CompilerParams(
            dimension_semantics=("parallel",),
            vmem_limit_bytes=vmem_limit),
        cost_estimate=cost,
    )(patches, w_p, b_p)

    if N_pad != N or E_pad != E:
        out = out[:N, :E]
    tokens = out.reshape(BT, num_patches, E)
    return tokens, T, Wp


if __name__ == "__main__":
    # Small shapes consistent with the module: img 16x16, patch 4, 3 channels.
    B, C, T, H, W = 2, 3, 2, 16, 16
    P = 4
    E = 32  # embed_dim

    key = jax.random.PRNGKey(0)
    kx, kw, kb = jax.random.split(key, 3)

    x = jax.random.normal(kx, (B, C, T, H, W), dtype=jnp.float32)
    fan_in = C * P * P
    weight = jax.random.normal(kw, (E, C, P, P), dtype=jnp.float32) * (2.0 / fan_in) ** 0.5
    bias = jax.random.normal(kb, (E,), dtype=jnp.float32) * 0.01

    fwd = jax.jit(patch_embed_forward, static_argnums=(3,))
    tokens, T_out, W_out = fwd(x, weight, bias, P)
    tokens = jax.block_until_ready(tokens)

    # Pure-JAX reference (same math: im2col + matmul), using the same bf16
    # input rounding the kernel uses, accumulated in full f32.
    Hp, Wp = H // P, W // P
    x_bt = jnp.transpose(x, (0, 2, 1, 3, 4)).reshape(B * T, C, H, W)
    ref_p = x_bt.reshape(B * T, C, Hp, P, Wp, P)
    ref_p = jnp.transpose(ref_p, (0, 2, 4, 1, 3, 5)).reshape(B * T * Hp * Wp, C * P * P)
    ref_p = ref_p.astype(jnp.bfloat16).astype(jnp.float32)
    ref_w = weight.reshape(E, -1).T.astype(jnp.bfloat16).astype(jnp.float32)
    ref = jnp.dot(ref_p, ref_w, precision=jax.lax.Precision.HIGHEST) + bias
    ref = ref.reshape(B * T, Hp * Wp, E)

    assert tokens.shape == (B * T, (H // P) * (W // P), E)
    assert int(T_out) == T and int(W_out) == W // P
    assert jnp.allclose(tokens, ref, atol=1e-2, rtol=1e-2), (
        float(jnp.max(jnp.abs(tokens - ref))))

    print("KERNEL_OK")
</pallas_src>

<mosaic_0001>
module attributes {stable_mosaic.version = 11 : i64} {
  func.func @_patch_proj_kernel(%arg0: i32, %arg1: memref<64x48xbf16, #tpu.memory_space<vmem>>, %arg2: memref<48x128xbf16, #tpu.memory_space<vmem>>, %arg3: memref<1x128xf32, #tpu.memory_space<vmem>>, %arg4: memref<64x128xf32, #tpu.memory_space<vmem>>) attributes {dimension_semantics = [#tpu.dimension_semantics<parallel>], iteration_bounds = array<i64: 1>, scalar_prefetch = 0 : i64, scratch_operands = 0 : i64, tpu.core_type = #tpu.core_type<tc>, window_params = [{transform_indices = @transform_0, window_bounds = array<i64: 64, 48>}, {pipeline_mode = #tpu.pipeline_mode<synchronous>, transform_indices = @transform_1, window_bounds = array<i64: 48, 128>}, {pipeline_mode = #tpu.pipeline_mode<synchronous>, transform_indices = @transform_2, window_bounds = array<i64: 1, 128>}, {transform_indices = @transform_3, window_bounds = array<i64: 64, 128>}]} {
    %c0 = arith.constant 0 : index
    %c0_0 = arith.constant 0 : index
    %0 = vector.load %arg1[%c0, %c0_0] : memref<64x48xbf16, #tpu.memory_space<vmem>>, vector<64x48xbf16>
    %c0_1 = arith.constant 0 : index
    %c0_2 = arith.constant 0 : index
    %1 = vector.load %arg2[%c0_1, %c0_2] : memref<48x128xbf16, #tpu.memory_space<vmem>>, vector<48x128xbf16>
    %cst = arith.constant dense<0.000000e+00> : vector<64x128xf32>
    %2 = tpu.matmul %0, %1, %cst {dimension_numbers = #tpu.dot_dimension_numbers<[1], [0], [0], [1], [0, 0, 1, 1], [], []>} : vector<64x48xbf16>, vector<48x128xbf16>, vector<64x128xf32> -> vector<64x128xf32>
    %c0_3 = arith.constant 0 : index
    %c0_4 = arith.constant 0 : index
    %3 = vector.load %arg3[%c0_3, %c0_4] : memref<1x128xf32, #tpu.memory_space<vmem>>, vector<1x128xf32>
    %4 = vector.broadcast %3 : vector<1x128xf32> to vector<64x128xf32>
    %5 = arith.addf %2, %4 : vector<64x128xf32>
    %c0_5 = arith.constant 0 : index
    %c0_6 = arith.constant 0 : index
    %6 = vector.load %arg4[%c0_5, %c0_6] : memref<64x128xf32, #tpu.memory_space<vmem>>, vector<64x128xf32>
    tpu.vector_store %arg4[%c0_5, %c0_6], %5 {strides = array<i32>} : memref<64x128xf32, #tpu.memory_space<vmem>>, vector<64x128xf32>,
    return
  }
  func.func @transform_0(%arg0: i32) -> (i32, i32) {
    %c0_i32 = arith.constant 0 : i32
    %c0_i32_0 = arith.constant 0 : i32
    return %arg0, %c0_i32 : i32, i32
  }
  func.func @transform_1(%arg0: i32) -> (i32, i32) {
    %c0_i32 = arith.constant 0 : i32
    %c0_i32_0 = arith.constant 0 : i32
    %c0_i32_1 = arith.constant 0 : i32
    return %c0_i32, %c0_i32_0 : i32, i32
  }
  func.func @transform_2(%arg0: i32) -> (i32, i32) {
    %c0_i32 = arith.constant 0 : i32
    %c0_i32_0 = arith.constant 0 : i32
    %c0_i32_1 = arith.constant 0 : i32
    return %c0_i32, %c0_i32_0 : i32, i32
  }
  func.func @transform_3(%arg0: i32) -> (i32, i32) {
    %c0_i32 = arith.constant 0 : i32
    %c0_i32_0 = arith.constant 0 : i32
    return %arg0, %c0_i32 : i32, i32
  }
}

</mosaic_0001>

<llo_original>
// kernel: patch_embed_forward.1
$region0: #{patch_embed_forward.1}
  #allocation0 [shape = 'u32[]', space=smem, size = 0x4, offset = 0x4, fixed_abs, tag = 'smem constant byte address 0x4 - core index']
  #allocation1 [shape = 'u32[144,128]{1,0:T(1,128)}', space=vmem, size = 0x12000, scoped, tag = 'internal scratch']
  %s0 = inlined_call_operand.vmem [shape: bf16[64,48], index: 0, kind: input, shape index: {}]
  %s1 = inlined_call_operand.vmem [shape: bf16[48,128], index: 1, kind: input, shape index: {}]
  %s2 = inlined_call_operand.vmem [shape: f32[1,128], index: 2, kind: input, shape index: {}]
  %s3 = inlined_call_operand.hbm [shape: f32[64,128], index: 3, kind: output, shape index: {}]
  %s4 = sld [smem:[#allocation0]]
  $region22: #{patch_embed_forward.1} parent=0
    _
  %s6 = ssub.s32 1, %s4
  %s7 = scalar_select 0, %s6, %s4
  $region1: #{patch_embed_forward.1} parent=0
    #allocation2 [shape = 'u8[32768]{0}', space=vmem, size = 0x8000, scoped, tag = 'output window, operand 0, single buffered']
    #allocation3 [shape = 's32[1]{0}', space=sflag, size = 0x4, scoped, tag = 'scoped memory for patch_embed_forward.1']
    %8 = vsyncpa [#allocation3], 0
    // Predicated region
    $region2: #{patch_embed_forward.1} parent=1 // pred_check
      _
    $region3: #{patch_embed_forward.1} parent=1 // pred_check_branch
      %10 = sbr.rel (0) target = $region5
    $region4: #{patch_embed_forward.1} parent=1 // pred_region
      _
    $region5: #{patch_embed_forward.1} parent=1 // pred_fallthru
      _
    // Predicated region
    $region6: #{patch_embed_forward.1} parent=1 // pred_check
      _
    $region7: #{patch_embed_forward.1} parent=1 // pred_check_branch
      %12 = sbr.rel (0) target = $region9
    $region8: #{patch_embed_forward.1} parent=1 // pred_region
      _
    $region9: #{patch_embed_forward.1} parent=1 // pred_fallthru
      _
    // Predicated region
    $region10: #{patch_embed_forward.1} parent=1 // pred_check
      _
    $region11: #{patch_embed_forward.1} parent=1 // pred_check_branch
      %14 = sbr.rel (0) target = $region13
    $region12: #{patch_embed_forward.1} parent=1 // pred_region
      _
    $region13: #{patch_embed_forward.1} parent=1 // pred_fallthru
      _
    %v16 = vld [vmem:[%s0] sm:$0xf]
    %v17 = vld [vmem:[%s0 + $0x4] sm:$0xf]
    %v18 = vld [vmem:[%s0 + $0x8] sm:$0xf]
    %v19 = vld [vmem:[%s0 + $0xc] sm:$0xf]
    %v20 = vld [vmem:[%s0 + $0x10] sm:$0xf]
    %v21 = vld [vmem:[%s0 + $0x14] sm:$0xf]
    %v22 = vld [vmem:[%s0 + $0x18] sm:$0xf]
    %v23 = vld [vmem:[%s0 + $0x1c] sm:$0xf]
    %v24 = vld [vmem:[%s1] sm:$0xf]
    %v25 = vld [vmem:[%s1 + $0x4] sm:$0xf]
    %v26 = vld [vmem:[%s1 + $0x8] sm:$0xf]
    %v27 = vld [vmem:[%s1 + $0xc] sm:$0xf]
    %v28 = vld [vmem:[%s1 + $0x10] sm:$0xf]
    %v29 = vld [vmem:[%s1 + $0x14] sm:$0xf]
    %v30 = vld [vmem:[%s2] sm:$0x1]
    %v32 = vlaneseq
    %v33 = vshrl.u32 %v32, 7
    %v34 = vsub.s32 0, %v33
    %v35 = vrot.slane %v30, %v34
    %v45 = vunpack.c.l.b16 %v16
    %v46 = vunpack.c.l.b16 %v17
    %v47 = vunpack.c.l.b16 %v18
    %v48 = vunpack.c.l.b16 %v19
    %v49 = vunpack.c.l.b16 %v20
    %v50 = vunpack.c.l.b16 %v21
    %v51 = vunpack.c.l.b16 %v22
    %v52 = vunpack.c.l.b16 %v23
    %v53 = vpack.c.b16 %v46, %v45
    %v54 = vpack.c.b16 %v48, %v47
    %v55 = vpack.c.b16 %v50, %v49
    %v56 = vpack.c.b16 %v52, %v51
    %v63 = vunpack.c.l.b16 %v24
    %v64 = vunpack.c.l.b16 %v25
    %v65 = vunpack.c.l.b16 %v26
    %v66 = vunpack.c.l.b16 %v27
    %v67 = vunpack.c.l.b16 %v28
    %v68 = vunpack.c.l.b16 %v29
    %v69 = vpack.c.b16 %v64, %v63
    %v70 = vpack.c.b16 %v66, %v65
    %v71 = vpack.c.b16 %v68, %v67
    %vm75 = vcmask 392192
    %v77 = vsel %vm75, %v53, 0
    %v80 = vsel %vm75, %v54, 0
    %v83 = vsel %vm75, %v55, 0
    %v86 = vsel %vm75, %v56, 0
    %88 = vmatprep.subr.bf16.mxu0 0
    %89 = vmatpush1.bf16.msra.mxu0 %v69
    %90 = vmatprep.subr.bf16.mxu0 0
    %91 = vmatpush1.bf16.msra.mxu0 %v70
    %92 = vmatprep.subr.bf16.mxu0 0
    %93 = vmatpush1.bf16.msra.mxu0 %v71
    %94 = vmatprep.subr.bf16.mxu0 0
    %95 = vmatpush1.bf16.msra.mxu0 0
    %96 = vmatprep.subr.bf16.mxu0 0
    %97 = vmatpush1.bf16.msra.mxu0 0
    %98 = vmatprep.subr.bf16.mxu0 0
    %99 = vmatpush1.bf16.msra.mxu0 0
    %100 = vmatprep.subr.bf16.mxu0 0
    %101 = vmatpush1.bf16.msra.mxu0 0
    %102 = vmatprep.subr.bf16.mxu0 0
    %103 = vmatpush1.bf16.msra.mxu0 0
    %104 = vmatprep.subr.bf16.mxu0 0
    %105 = vmatpush1.bf16.msra.mxu0 0
    %106 = vmatprep.subr.bf16.mxu0 0
    %107 = vmatpush1.bf16.msra.mxu0 0
    %108 = vmatprep.subr.bf16.mxu0 0
    %109 = vmatpush1.bf16.msra.mxu0 0
    %110 = vmatprep.subr.bf16.mxu0 0
    %111 = vmatpush1.bf16.msra.mxu0 0
    %112 = vmatprep.subr.bf16.mxu0 0
    %113 = vmatpush1.bf16.msra.mxu0 0
    %114 = vmatprep.subr.bf16.mxu0 0
    %115 = vmatpush1.bf16.msra.mxu0 0
    %116 = vmatprep.subr.bf16.mxu0 0
    %117 = vmatpush1.bf16.msra.mxu0 0
    %118 = vmatprep.subr.bf16.mxu0 0
    %119 = vmatpush1.bf16.msra.mxu0 0
    %120 = vmatprep.mubr.bf16.mxu0 0
    %121 = vmatmul.mubr.bf16.gmra.mrb[0].mxu0 %v77
    %v122 = vpop.f32.mrb[0].mxu0
    %v123 = vadd.f32 %v35, %v122
    %v124 = vpop.f32.mrb[0].mxu0
    %v125 = vpop.f32.mrb[0].mxu0
    %v126 = vadd.f32 %v35, %v125
    %v127 = vpop.f32.mrb[0].mxu0
    %128 = vmatprep.mubr.bf16.mxu0 0
    %129 = vmatmul.mubr.bf16.gmra.mrb[0].mxu0 %v80
    %v130 = vpop.f32.mrb[0].mxu0
    %v131 = vadd.f32 %v35, %v130
    %v132 = vpop.f32.mrb[0].mxu0
    %v133 = vpop.f32.mrb[0].mxu0
    %v134 = vadd.f32 %v35, %v133
    %v135 = vpop.f32.mrb[0].mxu0
    %136 = vmatprep.mubr.bf16.mxu0 0
    %137 = vmatmul.mubr.bf16.gmra.mrb[0].mxu0 %v83
    %v138 = vpop.f32.mrb[0].mxu0
    %v139 = vadd.f32 %v35, %v138
    %v140 = vpop.f32.mrb[0].mxu0
    %v141 = vpop.f32.mrb[0].mxu0
    %v142 = vadd.f32 %v35, %v141
    %v143 = vpop.f32.mrb[0].mxu0
    %144 = vmatprep.mubr.bf16.mxu0 0
    %145 = vmatmul.mubr.bf16.gmra.mrb[0].mxu0 %v86
    %v146 = vpop.f32.mrb[0].mxu0
    %v147 = vadd.f32 %v35, %v146
    %v148 = vpop.f32.mrb[0].mxu0
    %v149 = vpop.f32.mrb[0].mxu0
    %v150 = vadd.f32 %v35, %v149
    %v151 = vpop.f32.mrb[0].mxu0
    %152 = vdwg.mxu0
    %153 = vst [vmem:[#allocation2] sm:$0xff] %v123
    %154 = vst [vmem:[#allocation2 + $0x8] sm:$0xff] %v126
    %155 = vst [vmem:[#allocation2 + $0x10] sm:$0xff] %v131
    %156 = vst [vmem:[#allocation2 + $0x18] sm:$0xff] %v134
    %157 = vst [vmem:[#allocation2 + $0x20] sm:$0xff] %v139
    %158 = vst [vmem:[#allocation2 + $0x28] sm:$0xff] %v142
    %159 = vst [vmem:[#allocation2 + $0x30] sm:$0xff] %v147
    %160 = vst [vmem:[#allocation2 + $0x38] sm:$0xff] %v150
    // Predicated region
    $region14: #{patch_embed_forward.1} parent=1 // pred_check
      _
    $region15: #{patch_embed_forward.1} parent=1 // pred_check_branch
      %162 = sbr.rel (0) target = $region17
    $region16: #{patch_embed_forward.1} parent=1 // pred_region
      %s164 = ssub.s32 1024, 1024
      %165 = vsyncadd [#allocation3], %s164
      %s166 = sshll.u32 [#allocation2], 4
      %s167 = int_to_ptr.vmem [resolvable:$true] %s166
      %172 = dma.vmem_to_hbm [thread:$0]  %s167, 1024, %s3, [#allocation3], 128, 128, 8
    $region17: #{patch_embed_forward.1} parent=1 // pred_fallthru
      _
    // Predicated region
    $region18: #{patch_embed_forward.1} parent=1 // pred_check
      _
    $region19: #{patch_embed_forward.1} parent=1 // pred_check_branch
      %174 = sbr.rel (0) target = $region21
    $region20: #{patch_embed_forward.1} parent=1 // pred_region
      %175 = dma.done [#allocation3], 1024
    $region21: #{patch_embed_forward.1} parent=1 // pred_fallthru
      _
    %176 = vsyncpa [#allocation3], 1

</llo_original>
